<compile_context>
chip_gen: v7x
topology: tpu7x:2x2x1
jax: 0.10.0
libtpu: 0.0.40
codegen_flags: <defaults>
</compile_context>

<pallas_src>
import functools

import jax
import jax.numpy as jnp
from jax.experimental import pallas as pl
from jax.experimental.pallas import tpu as pltpu

LANES = 128
SUBLANES = 8
_PAD_LOGIT = -30.0   # sigmoid(-30) ~ 9.4e-14: padded elements contribute ~0 everywhere.


def _round_up(x, m):
    return -(-x // m) * m


def _pow_gamma(z, gamma):
    """z ** gamma for z >= 0, special-casing cheap gammas (EUP-friendly)."""
    if gamma == 0.0:
        return jnp.ones_like(z)
    if gamma == 0.5:
        return jnp.sqrt(z)
    if gamma == 1.0:
        return z
    if gamma == 1.5:
        return z * jnp.sqrt(z)
    if gamma == 2.0:
        return z * z
    safe = jnp.where(z > 0.0, z, 1.0)
    return jnp.where(z > 0.0, jnp.exp(gamma * jnp.log(safe)), 0.0)


def _combo_loss_kernel(preds_ref, targets_ref, out_ref, *,
                       alpha, gamma, nb, strip_rows):
    c = pl.program_id(0)                        # chunk (parallel axis)
    j = pl.program_id(1)                        # row-block within chunk (reduction axis)
    bpc = pl.num_programs(1)
    block_rows, lanes = preds_ref.shape
    n_strips = block_rows // strip_rows

    @pl.when(j == 0)
    def _init():
        out_ref[...] = jnp.zeros(out_ref.shape, out_ref.dtype)

    # Skip clamped overflow steps of the last chunk: their index_map re-points at block
    # nb-1 and accumulating it twice would corrupt the sums.
    @pl.when(c * bpc + j < nb)
    def _accumulate():
        def strip(s, carry):
            f_acc, i_acc, s_acc = carry
            r0 = pl.multiple_of(s * strip_rows, strip_rows)
            x = preds_ref[pl.ds(r0, strip_rows), :].astype(jnp.float32)
            t = targets_ref[pl.ds(r0, strip_rows), :].astype(jnp.float32)

            # Sigmoid + numerically stable BCE-with-logits, sharing e = exp(-|x|) and
            # (1 + e); reciprocal goes to the otherwise-idle EUP slot.
            e = jnp.exp(-jnp.abs(x))
            one_pe = 1.0 + e
            inv = pl.reciprocal(one_pe, approx=True)
            p = jnp.where(x >= 0.0, inv, e * inv)
            ce = jnp.maximum(x, 0.0) - x * t + jnp.log(one_pe)

            # Focal modulation (torchvision sigmoid_focal_loss), algebraically reduced:
            #   1 - p_t = p + t - 2*p*t,   alpha_t = (1-alpha) + (2*alpha - 1)*t.
            pt = p * t
            z = jnp.maximum(p + t - (pt + pt), 0.0)   # clamp: approx recip can push p>1
            alpha_t = (1.0 - alpha) + (2.0 * alpha - 1.0) * t
            focal = alpha_t * ce * _pow_gamma(z, gamma)

            def fold(v):
                # (strip_rows, 128) -> (8, 128) partial sums: cross-vreg VPU adds only,
                # no per-strip XLU tree reduce.
                return jnp.sum(
                    v.reshape(strip_rows // SUBLANES, SUBLANES, lanes), axis=0)

            return (f_acc + fold(focal), i_acc + fold(pt), s_acc + fold(p + t))

        zero = jnp.zeros((SUBLANES, LANES), jnp.float32)
        unroll = True if n_strips <= 8 else 8
        f_acc, i_acc, s_acc = jax.lax.fori_loop(
            0, n_strips, strip, (zero, zero, zero), unroll=unroll)

        out_ref[0, 0] += f_acc
        out_ref[0, 1] += i_acc
        out_ref[0, 2] += s_acc


def combo_loss(preds, targets, *, alpha=0.75, gamma=1.5, dice_weight=0.5,
               smooth=1e-6, block_rows=4096, strip_rows=128, num_chunks=1):
    """FocalLoss(mean) + dice_weight * DiceLoss over NCHW logits/targets -> scalar f32.

    Tuning notes:
      * Inputs may be bf16 (and targets bf16) - they are cast to f32 in-kernel; this
        halves HBM traffic and is the main win on HBM-bound v5e.
      * block_rows=4096 is safe everywhere; raise to 8192 on v6e/v7x to amortize the
        ~0.35us per-grid-step overhead (VMEM limit is set from the actual tile size).
      * num_chunks=1 for single-TensorCore v5e/v6e; pass num_chunks=2 on v7x so the
        "parallel" chunk axis can split across its two TensorCores.
    """
    n_total = int(preds.size)
    flat_p = jnp.reshape(preds, (-1,))
    flat_t = jnp.reshape(targets, (-1,))

    rows_raw = -(-n_total // LANES)
    rows8 = _round_up(rows_raw, SUBLANES)

    # Strip size (multiple of 8 sublanes), block size (multiple of strip), block count.
    sr = max(SUBLANES, min(int(strip_rows), int(block_rows), rows8))
    sr = (sr // SUBLANES) * SUBLANES
    bmax = _round_up(max(int(block_rows), sr), sr)
    nb = -(-rows8 // bmax)                       # number of row blocks
    br = _round_up(-(-rows8 // nb), sr)          # rows spread evenly -> minimal padding
    padded_rows = nb * br
    padded = padded_rows * LANES

    if padded != n_total:
        # Pad with a large negative logit so pad elements contribute ~0 to focal and
        # dice - no per-element mask is needed in the kernel.
        # TODO(synk): for ragged shapes this rewrites the tensor once in HBM; a masked
        # slow path for only the final row-block would avoid the copy entirely.
        flat_p = jnp.pad(flat_p, (0, padded - n_total), constant_values=_PAD_LOGIT)
        flat_t = jnp.pad(flat_t, (0, padded - n_total))
    p2d = flat_p.reshape(padded_rows, LANES)
    t2d = flat_t.reshape(padded_rows, LANES)

    nc = max(1, min(int(num_chunks), nb))        # chunks (v7x: 2 TCs share the work)
    bpc = -(-nb // nc)                           # row blocks per chunk

    kernel = functools.partial(_combo_loss_kernel, alpha=float(alpha),
                               gamma=float(gamma), nb=nb, strip_rows=sr)

    def in_map(c, j):
        return (jnp.minimum(c * bpc + j, nb - 1), 0)

    # 2 double-buffered input tiles per array + headroom.
    in_buf_bytes = 2 * br * LANES * (p2d.dtype.itemsize + t2d.dtype.itemsize)
    vmem_limit = int(min(96 << 20, max(32 << 20, 2 * in_buf_bytes + (4 << 20))))

    # TODO(synk): on v7x, verify via xprof that the "parallel" chunk axis actually runs
    # on both TensorCores; if not, switch it to pltpu.CORE_PARALLEL.
    partials = pl.pallas_call(
        kernel,
        grid=(nc, bpc),
        in_specs=[pl.BlockSpec((br, LANES), in_map),
                  pl.BlockSpec((br, LANES), in_map)],
        out_specs=pl.BlockSpec((1, 3, SUBLANES, LANES), lambda c, j: (c, 0, 0, 0)),
        out_shape=jax.ShapeDtypeStruct((nc, 3, SUBLANES, LANES), jnp.float32),
        compiler_params=pltpu.CompilerParams(
            dimension_semantics=("parallel", "arbitrary"),
            vmem_limit_bytes=vmem_limit),
    )(p2d, t2d)

    # Tiny epilogue: collapse the vreg-shaped per-chunk accumulators and combine.
    sums = jnp.sum(partials, axis=(0, 2, 3))     # [focal_sum, inter, p_sum + t_sum]
    focal_mean = sums[0] / jnp.float32(n_total)
    dice = (2.0 * sums[1] + smooth) / (sums[2] + smooth)
    return focal_mean + dice_weight * (1.0 - dice)


def _reference_combo_loss(preds, targets, *, alpha=0.75, gamma=1.5,
                          dice_weight=0.5, smooth=1e-6):
    x = preds.astype(jnp.float32)
    t = targets.astype(jnp.float32)
    p = jax.nn.sigmoid(x)
    ce = jnp.maximum(x, 0.0) - x * t + jnp.log1p(jnp.exp(-jnp.abs(x)))
    p_t = p * t + (1 - p) * (1 - t)
    focal = ce * (1 - p_t) ** gamma
    focal = (alpha * t + (1 - alpha) * (1 - t)) * focal
    focal = jnp.mean(focal)
    inter = jnp.sum(p * t)
    dice = (2.0 * inter + smooth) / (jnp.sum(p) + jnp.sum(t) + smooth)
    return focal + dice_weight * (1.0 - dice)


if __name__ == "__main__":
    key = jax.random.PRNGKey(0)
    k1, k2, k3, k4, k5, k6 = jax.random.split(key, 6)

    # NCHW binary-segmentation logits / targets (lane-aligned case).
    preds = jax.random.normal(k1, (2, 1, 16, 16), dtype=jnp.float32)
    targets = (jax.random.uniform(k2, (2, 1, 16, 16)) > 0.5).astype(jnp.float32)
    loss = jax.block_until_ready(combo_loss(preds, targets))
    ref = jax.block_until_ready(_reference_combo_loss(preds, targets))
    assert jnp.isfinite(loss), "kernel produced non-finite loss"
    assert abs(float(loss) - float(ref)) < 2e-3, (float(loss), float(ref))

    # Ragged size (exercises the harmless -30 logit tail pad).
    preds2 = jax.random.normal(k3, (1, 1, 17, 13), dtype=jnp.float32)
    targets2 = (jax.random.uniform(k4, (1, 1, 17, 13)) > 0.5).astype(jnp.float32)
    loss2 = jax.block_until_ready(combo_loss(preds2, targets2))
    ref2 = jax.block_until_ready(_reference_combo_loss(preds2, targets2))
    assert jnp.isfinite(loss2), "kernel produced non-finite loss (ragged)"
    assert abs(float(loss2) - float(ref2)) < 2e-3, (float(loss2), float(ref2))

    # bf16 multi-block / multi-chunk case: exercises the strip loop, the chunk split and
    # the clamped-overflow-step skip (nb=3 blocks, nc=2 chunks -> one skipped step).
    preds3 = jax.random.normal(k5, (2, 1, 96, 64), dtype=jnp.bfloat16)
    targets3 = (jax.random.uniform(k6, (2, 1, 96, 64)) > 0.5).astype(jnp.bfloat16)
    loss3 = jax.block_until_ready(
        combo_loss(preds3, targets3, block_rows=32, strip_rows=16, num_chunks=2))
    ref3 = jax.block_until_ready(_reference_combo_loss(preds3, targets3))
    assert jnp.isfinite(loss3), "kernel produced non-finite loss (bf16 multi-block)"
    assert abs(float(loss3) - float(ref3)) < 2e-3, (float(loss3), float(ref3))

    print("KERNEL_OK")
</pallas_src>

<mosaic_0001>
module attributes {stable_mosaic.version = 11 : i64} {
  func.func @_combo_loss_kernel(%arg0: i32, %arg1: i32, %arg2: memref<8x128xf32, #tpu.memory_space<vmem>>, %arg3: memref<8x128xf32, #tpu.memory_space<vmem>>, %arg4: memref<1x3x8x128xf32, #tpu.memory_space<vmem>>) attributes {dimension_semantics = [#tpu.dimension_semantics<parallel>, #tpu.dimension_semantics<arbitrary>], iteration_bounds = array<i64: 1, 1>, scalar_prefetch = 0 : i64, scratch_operands = 0 : i64, tpu.core_type = #tpu.core_type<tc>, window_params = [{transform_indices = @transform_0, window_bounds = array<i64: 8, 128>}, {transform_indices = @transform_1, window_bounds = array<i64: 8, 128>}, {transform_indices = @transform_2, window_bounds = array<i64: 1, 3, 8, 128>}]} {
    %c0_i32 = arith.constant 0 : i32
    %0 = arith.cmpi eq, %arg1, %c0_i32 : i32
    %1 = arith.extui %0 : i1 to i32
    %c0_i32_0 = arith.constant 0 : i32
    %2 = arith.cmpi ne, %1, %c0_i32_0 : i32
    scf.if %2 {
      %cst = arith.constant 0.000000e+00 : f32
      %8 = vector.broadcast %cst : f32 to vector<1x3x8x128xf32>
      %c0 = arith.constant 0 : index
      %c0_3 = arith.constant 0 : index
      %c0_4 = arith.constant 0 : index
      %c0_5 = arith.constant 0 : index
      %9 = vector.load %arg4[%c0, %c0_3, %c0_4, %c0_5] : memref<1x3x8x128xf32, #tpu.memory_space<vmem>>, vector<1x3x8x128xf32>
      tpu.vector_store %arg4[%c0, %c0_3, %c0_4, %c0_5], %8 {strides = array<i32>} : memref<1x3x8x128xf32, #tpu.memory_space<vmem>>, vector<1x3x8x128xf32>,
    } else {
    }
    %c1_i32 = arith.constant 1 : i32
    %3 = arith.muli %arg0, %c1_i32 : i32
    %4 = arith.addi %3, %arg1 : i32
    %c1_i32_1 = arith.constant 1 : i32
    %5 = arith.cmpi slt, %4, %c1_i32_1 : i32
    %6 = arith.extui %5 : i1 to i32
    %c0_i32_2 = arith.constant 0 : i32
    %7 = arith.cmpi ne, %6, %c0_i32_2 : i32
    scf.if %7 {
      %cst = arith.constant 0.000000e+00 : f32
      %8 = vector.broadcast %cst : f32 to vector<8x128xf32>
      %c0_i32_3 = arith.constant 0 : i32
      %c8_i32 = arith.constant 8 : i32
      %9 = arith.muli %c0_i32_3, %c8_i32 : i32
      %10 = tpu.assume_multiple %9, 8 : i32
      %11 = arith.index_cast %10 : i32 to index
      %c0 = arith.constant 0 : index
      %12 = vector.load %arg2[%11, %c0] : memref<8x128xf32, #tpu.memory_space<vmem>>, vector<8x128xf32>
      %13 = arith.index_cast %10 : i32 to index
      %c0_4 = arith.constant 0 : index
      %14 = vector.load %arg3[%13, %c0_4] : memref<8x128xf32, #tpu.memory_space<vmem>>, vector<8x128xf32>
      %15 = math.absf %12 : vector<8x128xf32>
      %cst_5 = arith.constant 0.000000e+00 : f32
      %16 = vector.broadcast %cst_5 : f32 to vector<8x128xf32>
      %17 = arith.subf %16, %15 : vector<8x128xf32>
      %18 = math.exp %17 : vector<8x128xf32>
      %cst_6 = arith.constant 1.000000e+00 : f32
      %19 = vector.broadcast %cst_6 : f32 to vector<8x128xf32>
      %20 = arith.addf %19, %18 : vector<8x128xf32>
      %21 = tpu.reciprocal %20 {approx = true} : vector<8x128xf32> -> vector<8x128xf32>
      %cst_7 = arith.constant 0.000000e+00 : f32
      %22 = vector.broadcast %cst_7 : f32 to vector<8x128xf32>
      %23 = arith.cmpf oge, %12, %22 : vector<8x128xf32>
      %24 = arith.mulf %18, %21 : vector<8x128xf32>
      %25 = arith.select %23, %21, %24 : vector<8x128xi1>, vector<8x128xf32>
      %cst_8 = arith.constant 0.000000e+00 : f32
      %26 = vector.broadcast %cst_8 : f32 to vector<8x128xf32>
      %27 = arith.maximumf %12, %26 : vector<8x128xf32>
      %28 = arith.mulf %12, %14 : vector<8x128xf32>
      %29 = arith.subf %27, %28 : vector<8x128xf32>
      %30 = math.log %20 : vector<8x128xf32>
      %31 = arith.addf %29, %30 : vector<8x128xf32>
      %32 = arith.mulf %25, %14 : vector<8x128xf32>
      %33 = arith.addf %25, %14 : vector<8x128xf32>
      %34 = arith.addf %32, %32 : vector<8x128xf32>
      %35 = arith.subf %33, %34 : vector<8x128xf32>
      %cst_9 = arith.constant 0.000000e+00 : f32
      %36 = vector.broadcast %cst_9 : f32 to vector<8x128xf32>
      %37 = arith.maximumf %35, %36 : vector<8x128xf32>
      %cst_10 = arith.constant 5.000000e-01 : f32
      %38 = vector.broadcast %cst_10 : f32 to vector<8x128xf32>
      %39 = arith.mulf %38, %14 : vector<8x128xf32>
      %cst_11 = arith.constant 2.500000e-01 : f32
      %40 = vector.broadcast %cst_11 : f32 to vector<8x128xf32>
      %41 = arith.addf %40, %39 : vector<8x128xf32>
      %42 = arith.mulf %41, %31 : vector<8x128xf32>
      %43 = math.sqrt %37 : vector<8x128xf32>
      %44 = arith.mulf %37, %43 : vector<8x128xf32>
      %45 = arith.mulf %42, %44 : vector<8x128xf32>
      %46 = vector.shape_cast %45 : vector<8x128xf32> to vector<1x8x128xf32>
      %cst_12 = arith.constant dense<0.000000e+00> : vector<8x128xf32>
      %47 = vector.multi_reduction <add>, %46, %cst_12 [0] : vector<1x8x128xf32> to vector<8x128xf32>
      %48 = arith.addf %8, %47 : vector<8x128xf32>
      %49 = vector.shape_cast %32 : vector<8x128xf32> to vector<1x8x128xf32>
      %cst_13 = arith.constant dense<0.000000e+00> : vector<8x128xf32>
      %50 = vector.multi_reduction <add>, %49, %cst_13 [0] : vector<1x8x128xf32> to vector<8x128xf32>
      %51 = arith.addf %8, %50 : vector<8x128xf32>
      %52 = arith.addf %25, %14 : vector<8x128xf32>
      %53 = vector.shape_cast %52 : vector<8x128xf32> to vector<1x8x128xf32>
      %cst_14 = arith.constant dense<0.000000e+00> : vector<8x128xf32>
      %54 = vector.multi_reduction <add>, %53, %cst_14 [0] : vector<1x8x128xf32> to vector<8x128xf32>
      %55 = arith.addf %8, %54 : vector<8x128xf32>
      %c1_i32_15 = arith.constant 1 : i32
      %c0_16 = arith.constant 0 : index
      %c0_17 = arith.constant 0 : index
      %c0_18 = arith.constant 0 : index
      %c0_19 = arith.constant 0 : index
      %56 = vector.load %arg4[%c0_16, %c0_17, %c0_18, %c0_19] : memref<1x3x8x128xf32, #tpu.memory_space<vmem>>, vector<1x1x8x128xf32>
      %57 = vector.shape_cast %56 : vector<1x1x8x128xf32> to vector<8x128xf32>
      %58 = arith.addf %57, %48 : vector<8x128xf32>
      %c0_20 = arith.constant 0 : index
      %c0_21 = arith.constant 0 : index
      %c0_22 = arith.constant 0 : index
      %c0_23 = arith.constant 0 : index
      %59 = vector.load %arg4[%c0_20, %c0_21, %c0_22, %c0_23] : memref<1x3x8x128xf32, #tpu.memory_space<vmem>>, vector<1x1x8x128xf32>
      %60 = vector.shape_cast %59 : vector<1x1x8x128xf32> to vector<8x128xf32>
      %61 = vector.shape_cast %58 : vector<8x128xf32> to vector<1x1x8x128xf32>
      tpu.vector_store %arg4[%c0_20, %c0_21, %c0_22, %c0_23], %61 {strides = array<i32>} : memref<1x3x8x128xf32, #tpu.memory_space<vmem>>, vector<1x1x8x128xf32>,
      %c0_24 = arith.constant 0 : index
      %c1 = arith.constant 1 : index
      %c0_25 = arith.constant 0 : index
      %c0_26 = arith.constant 0 : index
      %62 = vector.load %arg4[%c0_24, %c1, %c0_25, %c0_26] : memref<1x3x8x128xf32, #tpu.memory_space<vmem>>, vector<1x1x8x128xf32>
      %63 = vector.shape_cast %62 : vector<1x1x8x128xf32> to vector<8x128xf32>
      %64 = arith.addf %63, %51 : vector<8x128xf32>
      %c0_27 = arith.constant 0 : index
      %c1_28 = arith.constant 1 : index
      %c0_29 = arith.constant 0 : index
      %c0_30 = arith.constant 0 : index
      %65 = vector.load %arg4[%c0_27, %c1_28, %c0_29, %c0_30] : memref<1x3x8x128xf32, #tpu.memory_space<vmem>>, vector<1x1x8x128xf32>
      %66 = vector.shape_cast %65 : vector<1x1x8x128xf32> to vector<8x128xf32>
      %67 = vector.shape_cast %64 : vector<8x128xf32> to vector<1x1x8x128xf32>
      tpu.vector_store %arg4[%c0_27, %c1_28, %c0_29, %c0_30], %67 {strides = array<i32>} : memref<1x3x8x128xf32, #tpu.memory_space<vmem>>, vector<1x1x8x128xf32>,
      %c0_31 = arith.constant 0 : index
      %c2 = arith.constant 2 : index
      %c0_32 = arith.constant 0 : index
      %c0_33 = arith.constant 0 : index
      %68 = vector.load %arg4[%c0_31, %c2, %c0_32, %c0_33] : memref<1x3x8x128xf32, #tpu.memory_space<vmem>>, vector<1x1x8x128xf32>
      %69 = vector.shape_cast %68 : vector<1x1x8x128xf32> to vector<8x128xf32>
      %70 = arith.addf %69, %55 : vector<8x128xf32>
      %c0_34 = arith.constant 0 : index
      %c2_35 = arith.constant 2 : index
      %c0_36 = arith.constant 0 : index
      %c0_37 = arith.constant 0 : index
      %71 = vector.load %arg4[%c0_34, %c2_35, %c0_36, %c0_37] : memref<1x3x8x128xf32, #tpu.memory_space<vmem>>, vector<1x1x8x128xf32>
      %72 = vector.shape_cast %71 : vector<1x1x8x128xf32> to vector<8x128xf32>
      %73 = vector.shape_cast %70 : vector<8x128xf32> to vector<1x1x8x128xf32>
      tpu.vector_store %arg4[%c0_34, %c2_35, %c0_36, %c0_37], %73 {strides = array<i32>} : memref<1x3x8x128xf32, #tpu.memory_space<vmem>>, vector<1x1x8x128xf32>,
    } else {
    }
    return
  }
  func.func @transform_0(%arg0: i32, %arg1: i32) -> (i32, i32) {
    %c1_i32 = arith.constant 1 : i32
    %0 = arith.muli %arg0, %c1_i32 : i32
    %1 = arith.addi %0, %arg1 : i32
    %c0_i32 = arith.constant 0 : i32
    %2 = arith.minsi %1, %c0_i32 : i32
    %c0_i32_0 = arith.constant 0 : i32
    %c0_i32_1 = arith.constant 0 : i32
    return %2, %c0_i32_0 : i32, i32
  }
  func.func @transform_1(%arg0: i32, %arg1: i32) -> (i32, i32) {
    %c1_i32 = arith.constant 1 : i32
    %0 = arith.muli %arg0, %c1_i32 : i32
    %1 = arith.addi %0, %arg1 : i32
    %c0_i32 = arith.constant 0 : i32
    %2 = arith.minsi %1, %c0_i32 : i32
    %c0_i32_0 = arith.constant 0 : i32
    %c0_i32_1 = arith.constant 0 : i32
    return %2, %c0_i32_0 : i32, i32
  }
  func.func @transform_2(%arg0: i32, %arg1: i32) -> (i32, i32, i32, i32) {
    %c0_i32 = arith.constant 0 : i32
    %c0_i32_0 = arith.constant 0 : i32
    %c0_i32_1 = arith.constant 0 : i32
    %c0_i32_2 = arith.constant 0 : i32
    return %arg0, %c0_i32, %c0_i32_0, %c0_i32_1 : i32, i32, i32, i32
  }
}

</mosaic_0001>

<llo_original>
// kernel: tpu_custom_call.1
$region0: #{tpu_custom_call.1}
  #allocation0 [shape = 'u32[]', space=smem, size = 0x4, offset = 0x4, fixed_abs, tag = 'smem constant byte address 0x4 - core index']
  #allocation1 [shape = 'u32[144,128]{1,0:T(1,128)}', space=vmem, size = 0x12000, scoped, tag = 'internal scratch']
  %s0 = inlined_call_operand.hbm [shape: f32[8,128], index: 0, kind: input, shape index: {}]
  %s1 = inlined_call_operand.hbm [shape: f32[8,128], index: 1, kind: input, shape index: {}]
  %s2 = inlined_call_operand.hbm [shape: f32[1,3,8,128], index: 2, kind: output, shape index: {}]
  %s3 = sld [smem:[#allocation0]]
  $region34: #{tpu_custom_call.1} parent=0
    _
  %s5 = ssub.s32 1, %s3
  %s6 = scalar_select 0, %s5, %s3
  $region1: #{tpu_custom_call.1} parent=0
    #allocation2 [shape = 'u8[4096]{0}', space=vmem, size = 0x1000, scoped, tag = 'input window, operand 0, single buffered']
    #allocation3 [shape = 's32[1]{0}', space=sflag, size = 0x4, scoped, tag = 'scoped memory for tpu_custom_call.1']
    #allocation4 [shape = 's32[1]{0}', space=sflag, size = 0x4, scoped, tag = 'scoped memory for tpu_custom_call.1']
    #allocation5 [shape = 'u8[4096]{0}', space=vmem, size = 0x1000, scoped, tag = 'input window, operand 1, single buffered']
    #allocation6 [shape = 's32[1]{0}', space=sflag, size = 0x4, scoped, tag = 'scoped memory for tpu_custom_call.1']
    #allocation7 [shape = 'u8[12288]{0}', space=vmem, size = 0x3000, scoped, tag = 'output window, operand 0, single buffered']
    %7 = vsyncpa [#allocation3], 0
    %8 = vsyncpa [#allocation6], 0
    %9 = vsyncpa [#allocation4], 0
    // Predicated region
    $region2: #{tpu_custom_call.1} parent=1 // pred_check
      _
    $region3: #{tpu_custom_call.1} parent=1 // pred_check_branch
      %11 = sbr.rel (0) target = $region5
    $region4: #{tpu_custom_call.1} parent=1 // pred_region
      %s12 = sadd.s32 0, 0
      %p13 = scmp.lt.s32.totalorder %s12, 0
      %s14 = scalar_select %p13, %s12, 0
      %s16 = ssub.s32 128, 128
      %17 = vsyncadd [#allocation3], %s16
      %s18 = smul.addr %s14, 128
      %s19 = scalar_lea.hbm %s0, %s18
      %s21 = sshll.u32 [#allocation2], 4
      %s22 = int_to_ptr.vmem [resolvable:$true] %s21
      %24 = dma.hbm_to_vmem [thread:$0]  %s19, 128, %s22, [#allocation3]
    $region5: #{tpu_custom_call.1} parent=1 // pred_fallthru
      _
    // Predicated region
    $region6: #{tpu_custom_call.1} parent=1 // pred_check
      _
    $region7: #{tpu_custom_call.1} parent=1 // pred_check_branch
      %26 = sbr.rel (0) target = $region9
    $region8: #{tpu_custom_call.1} parent=1 // pred_region
      %s27 = sadd.s32 0, 0
      %p28 = scmp.lt.s32.totalorder %s27, 0
      %s29 = scalar_select %p28, %s27, 0
      %s31 = ssub.s32 128, 128
      %32 = vsyncadd [#allocation6], %s31
      %s33 = smul.addr %s29, 128
      %s34 = scalar_lea.hbm %s1, %s33
      %s36 = sshll.u32 [#allocation5], 4
      %s37 = int_to_ptr.vmem [resolvable:$true] %s36
      %39 = dma.hbm_to_vmem [thread:$0]  %s34, 128, %s37, [#allocation6]
    $region9: #{tpu_custom_call.1} parent=1 // pred_fallthru
      _
    // Predicated region
    $region10: #{tpu_custom_call.1} parent=1 // pred_check
      _
    $region11: #{tpu_custom_call.1} parent=1 // pred_check_branch
      %41 = sbr.rel (0) target = $region13
    $region12: #{tpu_custom_call.1} parent=1 // pred_region
      %42 = dma.done [#allocation3], 128
    $region13: #{tpu_custom_call.1} parent=1 // pred_fallthru
      _
    // Predicated region
    $region14: #{tpu_custom_call.1} parent=1 // pred_check
      _
    $region15: #{tpu_custom_call.1} parent=1 // pred_check_branch
      %44 = sbr.rel (0) target = $region17
    $region16: #{tpu_custom_call.1} parent=1 // pred_region
      %45 = dma.done [#allocation6], 128
    $region17: #{tpu_custom_call.1} parent=1 // pred_fallthru
      _
    %s46 = sadd.s32 0, 0
    %p47 = scmp.lt.s32.totalorder %s46, 0
    %s48 = scalar_select %p47, %s46, 0
    %s49 = sadd.s32 0, 0
    %p50 = scmp.lt.s32.totalorder %s49, 0
    %s51 = scalar_select %p50, %s49, 0
    %p52 = scmp.eq.s32.totalorder 0, 0
    // Predicated region
    $region18: #{tpu_custom_call.1} parent=1 // pred_check
      %p53 = pneg %p52
    $region19: #{tpu_custom_call.1} parent=1 // pred_check_branch
      %55 = sbr.rel (%p53) target = $region21
    $region20: #{tpu_custom_call.1} parent=1 // pred_region
      %56 = vst [vmem:[#allocation7] sm:$0xff] 0.0
      %57 = vst [vmem:[#allocation7 + $0x8] sm:$0xff] 0.0
      %58 = vst [vmem:[#allocation7 + $0x10] sm:$0xff] 0.0
    $region21: #{tpu_custom_call.1} parent=1 // pred_fallthru
      _
    %s59 = sadd.s32 0, 0
    %p60 = scmp.lt.s32.totalorder %s59, 1
    // Predicated region
    $region22: #{tpu_custom_call.1} parent=1 // pred_check
      %p61 = pneg %p60
    $region23: #{tpu_custom_call.1} parent=1 // pred_check_branch
      %63 = sbr.rel (%p61) target = $region25
    $region24: #{tpu_custom_call.1} parent=1 // pred_region
      %v64 = vld [vmem:[#allocation2] sm:$0xff]
      %v65 = vld [vmem:[#allocation5] sm:$0xff]
      %v66 = vand.u32 2147483647, %v64
      %v67 = vsub.f32 0.0, %v66
      %v68 = vmul.f32 %v67, 1.442695
      %v69 = vpow.pop %v68
      %v70 = vadd.f32 %v69, 1.0
      %v71 = vrcp.pop %v70
      %vm72 = vcmp.ge.f32.partialorder %v64, 0.0
      %v73 = vmul.f32 %v69, %v71
      %v74 = vsel %vm72, %v71, %v73
      %v75 = vmax.f32 %v64, 0.0
      %v76 = vmul.f32 %v64, %v65
      %v77 = vsub.f32 %v75, %v76
      %v78 = vlog2.pop %v70
      %v79 = vmul.f32 %v78, 0.6931472
      %v80 = vadd.f32 %v77, %v79
      %v81 = vmul.f32 %v74, %v65
      %v82 = vadd.f32 %v74, %v65
      %v83 = vadd.f32 %v81, %v81
      %v84 = vsub.f32 %v82, %v83
      %v85 = vmax.f32 %v84, 0.0
      %v86 = vmul.f32 %v65, 0.5
      %v87 = vadd.f32 %v86, 0.25
      %v88 = vmul.f32 %v87, %v80
      %v89 = vrsqrt.pop %v85
      %v90 = vmul.f32 %v85, %v89
      %vm91 = vcmp.eq.f32.partialorder %v85, inf
      %v92 = vsel %vm91, %v85, %v90
      %vm93 = vcmp.eq.f32.partialorder %v85, 0.0
      %v94 = vand.u32 %v85, 2147483648
      %v95 = vsel %vm93, %v94, %v92
      %v96 = vmul.f32 %v85, %v95
      %v97 = vmul.f32 %v88, %v96
      %v98 = vadd.f32 %v97, 0.0
      %v99 = vadd.f32 %v98, 0.0
      %v100 = vadd.f32 %v81, 0.0
      %v101 = vadd.f32 %v100, 0.0
      %v102 = vadd.f32 %v82, 0.0
      %v103 = vadd.f32 %v102, 0.0
      %v104 = vld [vmem:[#allocation7] sm:$0xff]
      %v105 = vadd.f32 %v104, %v99
      %106 = vst [vmem:[#allocation7] sm:$0xff] %v105
      %s107 = scalar_lea.vmem [#allocation7], 8
      %v108 = vld [vmem:[%s107] sm:$0xff]
      %v109 = vadd.f32 %v108, %v101
      %110 = vst [vmem:[%s107] sm:$0xff] %v109
      %s111 = scalar_lea.vmem [#allocation7], 16
      %v112 = vld [vmem:[%s111] sm:$0xff]
      %v113 = vadd.f32 %v112, %v103
      %114 = vst [vmem:[%s111] sm:$0xff] %v113
    $region25: #{tpu_custom_call.1} parent=1 // pred_fallthru
      _
    // Predicated region
    $region26: #{tpu_custom_call.1} parent=1 // pred_check
      _
    $region27: #{tpu_custom_call.1} parent=1 // pred_check_branch
      %116 = sbr.rel (0) target = $region29
    $region28: #{tpu_custom_call.1} parent=1 // pred_region
      %s118 = ssub.s32 384, 384
      %119 = vsyncadd [#allocation4], %s118
      %s120 = sshll.u32 [#allocation7], 4
      %s121 = int_to_ptr.vmem [resolvable:$true] %s120
      %126 = dma.vmem_to_hbm [thread:$0]  %s121, 384, %s2, [#allocation4], 128, 128, 8
    $region29: #{tpu_custom_call.1} parent=1 // pred_fallthru
      _
    // Predicated region
    $region30: #{tpu_custom_call.1} parent=1 // pred_check
      _
    $region31: #{tpu_custom_call.1} parent=1 // pred_check_branch
      %128 = sbr.rel (0) target = $region33
    $region32: #{tpu_custom_call.1} parent=1 // pred_region
      %129 = dma.done [#allocation4], 384
    $region33: #{tpu_custom_call.1} parent=1 // pred_fallthru
      _
    %130 = vsyncpa [#allocation3], 1
    %131 = vsyncpa [#allocation6], 1
    %132 = vsyncpa [#allocation4], 1

</llo_original>
